<compile_context>
chip_gen: v7x
topology: tpu7x:2x2x1
jax: 0.10.0
libtpu: 0.0.40
codegen_flags: <defaults>
</compile_context>

<pallas_src>
import functools

import jax
import jax.numpy as jnp
from jax.experimental import pallas as pl
from jax.experimental.pallas import tpu as pltpu


def _round_up(x, m):
    return ((x + m - 1) // m) * m


def _round_down(x, m):
    return (x // m) * m


def _choose_bm(B, bm_target):
    """Batch tile: multiple of 8 and, when B > 8, at least 2 batch tiles so
    the 'parallel' batch axis can feed both TensorCores on v7x."""
    if B <= 8:
        return 8
    nt = max(2, -(-B // bm_target))
    return _round_up(-(-B // nt), 8)


def _pad_to(a, shape):
    pads = [(0, t - s) for s, t in zip(a.shape, shape)]
    if all(p == (0, 0) for p in pads):
        return a
    return jnp.pad(a, pads)


def _text_feature_embedding_kernel(x_ref, w1_ref, b1_ref, w2_ref, b2_ref,
                                   logits_ref, proj_ref, acc_ref, *, inv_s):
    s = pl.program_id(1)

    @pl.when(s == 0)
    def _():
        acc_ref[...] = jnp.zeros_like(acc_ref)

    # Running f32 seq-sum of this [BM, ST, Fp] tile (x stays in native dtype
    # in VMEM; only the in-register accumulation is widened).
    # TODO(synk): if the sublane reduce saturates XLU/VALU on v7x, switch to a
    # resident ones[1,ST] MXU matmul for the seq reduction.
    acc_ref[...] += jnp.sum(x_ref[...], axis=1, dtype=jnp.float32)

    @pl.when(s == pl.num_programs(1) - 1)
    def _():
        # Mean over the *original* sequence length (padded rows are zero).
        x_mean = (acc_ref[...] * inv_s).astype(w1_ref.dtype)          # [BM, Fp]

        # Weights are pre-transposed in the wrapper: plain (1,0) contractions,
        # native weight dtype on the MXU, f32 accumulation.
        proj = jnp.dot(x_mean, w1_ref[...],
                       preferred_element_type=jnp.float32)            # [BM, Cp]
        proj = proj + b1_ref[...].astype(jnp.float32)

        logits = jnp.dot(proj.astype(w2_ref.dtype), w2_ref[...],
                         preferred_element_type=jnp.float32)          # [BM, Kp]
        logits = logits + b2_ref[...].astype(jnp.float32)

        proj_ref[...] = proj.astype(proj_ref.dtype)
        logits_ref[...] = logits.astype(logits_ref.dtype)


def text_feature_embedding(features, w1, b1, w2, b2, *, bm_target=256,
                           x_tile_bytes=None):
    """
    features: [B, F] or [B, S, F]
    w1: [concept_dim, feature_dim]   (PyTorch nn.Linear weight layout)
    b1: [concept_dim]
    w2: [nr_concepts, concept_dim]
    b2: [nr_concepts]
    returns (concept_logits [B, nr_concepts], projected [B, concept_dim])
    """
    if features.ndim == 2:
        features = features[:, None, :]       # S = 1 -> mean is identity
    B, S, F = features.shape
    C = w1.shape[0]
    K = w2.shape[0]

    out_dtype = jnp.result_type(features.dtype, w1.dtype)

    # Chip VMEM capacity drives tile sizing (v7x: 64 MiB/TC, v5e/v6e: 128 MiB).
    try:
        vmem_cap = int(pltpu.get_tpu_info().vmem_capacity_bytes)
    except Exception:
        vmem_cap = 64 * 1024 * 1024
    if x_tile_bytes is None:
        x_tile_bytes = (16 * 1024 * 1024 if vmem_cap >= 100 * 1024 * 1024
                        else 6 * 1024 * 1024)
    budget = int(0.72 * vmem_cap)

    # Lane-dense padded widths; zero padding is numerically inert everywhere.
    Fp = _round_up(F, 128)
    Cp = _round_up(C, 128)
    Kp = _round_up(K, 128)

    x_isz = jnp.dtype(features.dtype).itemsize
    w_isz = jnp.dtype(w1.dtype).itemsize
    o_isz = jnp.dtype(out_dtype).itemsize

    BM = _choose_bm(B, bm_target)
    s_target = max(8, x_tile_bytes // max(1, BM * Fp * x_isz))
    ST = max(8, min(_round_down(s_target, 8), _round_up(S, 8)))

    def _vmem_bytes(bm, st, wbuf):
        x_b = 2 * bm * st * Fp * x_isz                               # streamed x
        w_b = wbuf * (Fp * Cp + Cp * Kp + Cp + Kp) * w_isz           # resident W/b
        acc_b = bm * Fp * 4                                          # f32 acc
        out_b = 2 * bm * (Cp + Kp) * o_isz                           # output tiles
        return x_b + w_b + acc_b + out_b

    while _vmem_bytes(BM, ST, 1) > budget and ST > 8:
        ST = max(8, _round_down(ST // 2, 8))
    while _vmem_bytes(BM, ST, 1) > budget and BM > 8:
        BM = max(8, _round_down(BM // 2, 8))

    Bp = _round_up(B, BM)
    Sp = _round_up(S, ST)

    x_p = _pad_to(jnp.asarray(features), (Bp, Sp, Fp))
    w1_t = _pad_to(jnp.asarray(w1).T, (Fp, Cp))                      # [Fp, Cp]
    w2_t = _pad_to(jnp.asarray(w2).T, (Cp, Kp))                      # [Cp, Kp]
    b1_p = _pad_to(jnp.asarray(b1)[None, :], (1, Cp))                # [1, Cp]
    b2_p = _pad_to(jnp.asarray(b2)[None, :], (1, Kp))                # [1, Kp]

    kernel = functools.partial(_text_feature_embedding_kernel,
                               inv_s=1.0 / float(S))                 # true S, not Sp
    grid = (Bp // BM, Sp // ST)

    def _build(weight_mode):
        def wspec(shape):
            idx = lambda b, s: (0,) * len(shape)
            if weight_mode is None:
                return pl.BlockSpec(shape, idx)
            return pl.BlockSpec(shape, idx, pipeline_mode=weight_mode)

        wbuf = 1 if weight_mode is not None else 2
        vmem_limit = int(min(0.9 * vmem_cap,
                             max(_vmem_bytes(BM, ST, wbuf) + (8 << 20), 32 << 20)))
        return pl.pallas_call(
            kernel,
            out_shape=(
                jax.ShapeDtypeStruct((Bp, Kp), out_dtype),
                jax.ShapeDtypeStruct((Bp, Cp), out_dtype),
            ),
            grid_spec=pltpu.PrefetchScalarGridSpec(
                num_scalar_prefetch=0,
                grid=grid,
                in_specs=[
                    pl.BlockSpec((BM, ST, Fp), lambda b, s: (b, s, 0)),  # streamed x
                    wspec((Fp, Cp)),                                     # resident w1^T
                    wspec((1, Cp)),                                      # resident b1
                    wspec((Cp, Kp)),                                     # resident w2^T
                    wspec((1, Kp)),                                      # resident b2
                ],
                out_specs=[
                    pl.BlockSpec((BM, Kp), lambda b, s: (b, 0)),
                    pl.BlockSpec((BM, Cp), lambda b, s: (b, 0)),
                ],
                scratch_shapes=[pltpu.VMEM((BM, Fp), jnp.float32)],      # seq-sum acc
            ),
            compiler_params=pltpu.CompilerParams(
                dimension_semantics=("parallel", "arbitrary"),
                vmem_limit_bytes=vmem_limit,
            ),
        )

    try:
        logits_p, proj_p = _build(pl.Buffered(1))(x_p, w1_t, b1_p, w2_t, b2_p)
    except Exception:
        # Fallback if single-buffered resident weight blocks are rejected.
        logits_p, proj_p = _build(None)(x_p, w1_t, b1_p, w2_t, b2_p)

    return logits_p[:B, :K], proj_p[:B, :C]


def _reference(features, w1, b1, w2, b2):
    if features.ndim == 3:
        features = features.mean(axis=1)
    proj = features @ w1.T + b1
    logits = proj @ w2.T + b2
    return logits, proj


if __name__ == "__main__":
    # Small deterministic shapes consistent with the module.
    batch, seq = 2, 8
    feature_dim, concept_dim, nr_concepts = 32, 16, 8

    key = jax.random.PRNGKey(0)
    k_x, k_w1, k_b1, k_w2, k_b2 = jax.random.split(key, 5)

    features = jax.random.normal(k_x, (batch, seq, feature_dim), dtype=jnp.float32)

    # Deterministic parameter init (PyTorch Linear-style uniform bounds).
    bound1 = 1.0 / (feature_dim ** 0.5)
    w1 = jax.random.uniform(k_w1, (concept_dim, feature_dim), jnp.float32,
                            -bound1, bound1)
    b1 = jax.random.uniform(k_b1, (concept_dim,), jnp.float32, -bound1, bound1)

    bound2 = 1.0 / (concept_dim ** 0.5)
    w2 = jax.random.uniform(k_w2, (nr_concepts, concept_dim), jnp.float32,
                            -bound2, bound2)
    b2 = jax.random.uniform(k_b2, (nr_concepts,), jnp.float32, -bound2, bound2)

    logits, proj = text_feature_embedding(features, w1, b1, w2, b2)
    jax.block_until_ready((logits, proj))

    ref_logits, ref_proj = _reference(features, w1, b1, w2, b2)
    assert logits.shape == (batch, nr_concepts)
    assert proj.shape == (batch, concept_dim)
    assert jnp.allclose(proj, ref_proj, atol=1e-5, rtol=1e-5)
    assert jnp.allclose(logits, ref_logits, atol=1e-5, rtol=1e-5)

    # Also exercise the 2-D [B, feature_dim] input path (no seq mean).
    logits2, proj2 = text_feature_embedding(features[:, 0, :], w1, b1, w2, b2)
    jax.block_until_ready((logits2, proj2))
    ref_logits2, ref_proj2 = _reference(features[:, 0, :], w1, b1, w2, b2)
    assert jnp.allclose(proj2, ref_proj2, atol=1e-5, rtol=1e-5)
    assert jnp.allclose(logits2, ref_logits2, atol=1e-5, rtol=1e-5)

    print("KERNEL_OK")
</pallas_src>

<mosaic_0001>
module attributes {stable_mosaic.version = 11 : i64} {
  func.func @_text_feature_embedding_kernel(%arg0: i32, %arg1: i32, %arg2: memref<8x8x128xf32, #tpu.memory_space<vmem>>, %arg3: memref<128x128xf32, #tpu.memory_space<vmem>>, %arg4: memref<1x128xf32, #tpu.memory_space<vmem>>, %arg5: memref<128x128xf32, #tpu.memory_space<vmem>>, %arg6: memref<1x128xf32, #tpu.memory_space<vmem>>, %arg7: memref<8x128xf32, #tpu.memory_space<vmem>>, %arg8: memref<8x128xf32, #tpu.memory_space<vmem>>, %arg9: memref<8x128xf32, #tpu.memory_space<vmem>>) attributes {dimension_semantics = [#tpu.dimension_semantics<parallel>, #tpu.dimension_semantics<arbitrary>], iteration_bounds = array<i64: 1, 1>, scalar_prefetch = 0 : i64, scratch_operands = 1 : i64, tpu.core_type = #tpu.core_type<tc>, window_params = [{transform_indices = @transform_0, window_bounds = array<i64: 8, 8, 128>}, {pipeline_mode = #tpu.pipeline_mode<synchronous>, transform_indices = @transform_1, window_bounds = array<i64: 128, 128>}, {pipeline_mode = #tpu.pipeline_mode<synchronous>, transform_indices = @transform_2, window_bounds = array<i64: 1, 128>}, {pipeline_mode = #tpu.pipeline_mode<synchronous>, transform_indices = @transform_3, window_bounds = array<i64: 128, 128>}, {pipeline_mode = #tpu.pipeline_mode<synchronous>, transform_indices = @transform_4, window_bounds = array<i64: 1, 128>}, {transform_indices = @transform_5, window_bounds = array<i64: 8, 128>}, {transform_indices = @transform_6, window_bounds = array<i64: 8, 128>}]} {
    %c0_i32 = arith.constant 0 : i32
    %0 = arith.cmpi eq, %arg1, %c0_i32 : i32
    %1 = arith.extui %0 : i1 to i32
    %c0_i32_0 = arith.constant 0 : i32
    %2 = arith.cmpi ne, %1, %c0_i32_0 : i32
    scf.if %2 {
      %cst_9 = arith.constant 0.000000e+00 : f32
      %11 = vector.broadcast %cst_9 : f32 to vector<8x128xf32>
      %c0_10 = arith.constant 0 : index
      %c0_11 = arith.constant 0 : index
      %12 = vector.load %arg9[%c0_10, %c0_11] : memref<8x128xf32, #tpu.memory_space<vmem>>, vector<8x128xf32>
      tpu.vector_store %arg9[%c0_10, %c0_11], %11 {strides = array<i32>} : memref<8x128xf32, #tpu.memory_space<vmem>>, vector<8x128xf32>,
    } else {
    }
    %c0 = arith.constant 0 : index
    %c0_1 = arith.constant 0 : index
    %3 = vector.load %arg9[%c0, %c0_1] : memref<8x128xf32, #tpu.memory_space<vmem>>, vector<8x128xf32>
    %c0_2 = arith.constant 0 : index
    %c0_3 = arith.constant 0 : index
    %c0_4 = arith.constant 0 : index
    %4 = vector.load %arg2[%c0_2, %c0_3, %c0_4] : memref<8x8x128xf32, #tpu.memory_space<vmem>>, vector<8x8x128xf32>
    %cst = arith.constant dense<0.000000e+00> : vector<8x128xf32>
    %5 = vector.multi_reduction <add>, %4, %cst [1] : vector<8x8x128xf32> to vector<8x128xf32>
    %6 = arith.addf %3, %5 : vector<8x128xf32>
    %c0_5 = arith.constant 0 : index
    %c0_6 = arith.constant 0 : index
    %7 = vector.load %arg9[%c0_5, %c0_6] : memref<8x128xf32, #tpu.memory_space<vmem>>, vector<8x128xf32>
    tpu.vector_store %arg9[%c0_5, %c0_6], %6 {strides = array<i32>} : memref<8x128xf32, #tpu.memory_space<vmem>>, vector<8x128xf32>,
    %c0_i32_7 = arith.constant 0 : i32
    %8 = arith.cmpi eq, %arg1, %c0_i32_7 : i32
    %9 = arith.extui %8 : i1 to i32
    %c0_i32_8 = arith.constant 0 : i32
    %10 = arith.cmpi ne, %9, %c0_i32_8 : i32
    scf.if %10 {
      %c0_9 = arith.constant 0 : index
      %c0_10 = arith.constant 0 : index
      %11 = vector.load %arg9[%c0_9, %c0_10] : memref<8x128xf32, #tpu.memory_space<vmem>>, vector<8x128xf32>
      %cst_11 = arith.constant 1.250000e-01 : f32
      %12 = vector.broadcast %cst_11 : f32 to vector<8x128xf32>
      %13 = arith.mulf %11, %12 : vector<8x128xf32>
      %c0_12 = arith.constant 0 : index
      %c0_13 = arith.constant 0 : index
      %14 = vector.load %arg3[%c0_12, %c0_13] : memref<128x128xf32, #tpu.memory_space<vmem>>, vector<128x128xf32>
      %cst_14 = arith.constant dense<0.000000e+00> : vector<8x128xf32>
      %15 = tpu.matmul %13, %14, %cst_14 {dimension_numbers = #tpu.dot_dimension_numbers<[1], [0], [0], [1], [0, 0, 1, 1], [], []>} : vector<8x128xf32>, vector<128x128xf32>, vector<8x128xf32> -> vector<8x128xf32>
      %c0_15 = arith.constant 0 : index
      %c0_16 = arith.constant 0 : index
      %16 = vector.load %arg4[%c0_15, %c0_16] : memref<1x128xf32, #tpu.memory_space<vmem>>, vector<1x128xf32>
      %17 = vector.broadcast %16 : vector<1x128xf32> to vector<8x128xf32>
      %18 = arith.addf %15, %17 : vector<8x128xf32>
      %c0_17 = arith.constant 0 : index
      %c0_18 = arith.constant 0 : index
      %19 = vector.load %arg5[%c0_17, %c0_18] : memref<128x128xf32, #tpu.memory_space<vmem>>, vector<128x128xf32>
      %cst_19 = arith.constant dense<0.000000e+00> : vector<8x128xf32>
      %20 = tpu.matmul %18, %19, %cst_19 {dimension_numbers = #tpu.dot_dimension_numbers<[1], [0], [0], [1], [0, 0, 1, 1], [], []>} : vector<8x128xf32>, vector<128x128xf32>, vector<8x128xf32> -> vector<8x128xf32>
      %c0_20 = arith.constant 0 : index
      %c0_21 = arith.constant 0 : index
      %21 = vector.load %arg6[%c0_20, %c0_21] : memref<1x128xf32, #tpu.memory_space<vmem>>, vector<1x128xf32>
      %22 = vector.broadcast %21 : vector<1x128xf32> to vector<8x128xf32>
      %23 = arith.addf %20, %22 : vector<8x128xf32>
      %c0_22 = arith.constant 0 : index
      %c0_23 = arith.constant 0 : index
      %24 = vector.load %arg8[%c0_22, %c0_23] : memref<8x128xf32, #tpu.memory_space<vmem>>, vector<8x128xf32>
      tpu.vector_store %arg8[%c0_22, %c0_23], %18 {strides = array<i32>} : memref<8x128xf32, #tpu.memory_space<vmem>>, vector<8x128xf32>,
      %c0_24 = arith.constant 0 : index
      %c0_25 = arith.constant 0 : index
      %25 = vector.load %arg7[%c0_24, %c0_25] : memref<8x128xf32, #tpu.memory_space<vmem>>, vector<8x128xf32>
      tpu.vector_store %arg7[%c0_24, %c0_25], %23 {strides = array<i32>} : memref<8x128xf32, #tpu.memory_space<vmem>>, vector<8x128xf32>,
    } else {
    }
    return
  }
  func.func @transform_0(%arg0: i32, %arg1: i32) -> (i32, i32, i32) {
    %c0_i32 = arith.constant 0 : i32
    %c0_i32_0 = arith.constant 0 : i32
    return %arg0, %arg1, %c0_i32 : i32, i32, i32
  }
  func.func @transform_1(%arg0: i32, %arg1: i32) -> (i32, i32) {
    %c0_i32 = arith.constant 0 : i32
    %c0_i32_0 = arith.constant 0 : i32
    %c0_i32_1 = arith.constant 0 : i32
    return %c0_i32, %c0_i32_0 : i32, i32
  }
  func.func @transform_2(%arg0: i32, %arg1: i32) -> (i32, i32) {
    %c0_i32 = arith.constant 0 : i32
    %c0_i32_0 = arith.constant 0 : i32
    %c0_i32_1 = arith.constant 0 : i32
    return %c0_i32, %c0_i32_0 : i32, i32
  }
  func.func @transform_3(%arg0: i32, %arg1: i32) -> (i32, i32) {
    %c0_i32 = arith.constant 0 : i32
    %c0_i32_0 = arith.constant 0 : i32
    %c0_i32_1 = arith.constant 0 : i32
    return %c0_i32, %c0_i32_0 : i32, i32
  }
  func.func @transform_4(%arg0: i32, %arg1: i32) -> (i32, i32) {
    %c0_i32 = arith.constant 0 : i32
    %c0_i32_0 = arith.constant 0 : i32
    %c0_i32_1 = arith.constant 0 : i32
    return %c0_i32, %c0_i32_0 : i32, i32
  }
  func.func @transform_5(%arg0: i32, %arg1: i32) -> (i32, i32) {
    %c0_i32 = arith.constant 0 : i32
    %c0_i32_0 = arith.constant 0 : i32
    return %arg0, %c0_i32 : i32, i32
  }
  func.func @transform_6(%arg0: i32, %arg1: i32) -> (i32, i32) {
    %c0_i32 = arith.constant 0 : i32
    %c0_i32_0 = arith.constant 0 : i32
    return %arg0, %c0_i32 : i32, i32
  }
}

module attributes {stable_mosaic.version = 11 : i64} {
  func.func @_text_feature_embedding_kernel(%arg0: i32, %arg1: i32, %arg2: memref<8x8x128xf32, #tpu.memory_space<vmem>>, %arg3: memref<128x128xf32, #tpu.memory_space<vmem>>, %arg4: memref<1x128xf32, #tpu.memory_space<vmem>>, %arg5: memref<128x128xf32, #tpu.memory_space<vmem>>, %arg6: memref<1x128xf32, #tpu.memory_space<vmem>>, %arg7: memref<8x128xf32, #tpu.memory_space<vmem>>, %arg8: memref<8x128xf32, #tpu.memory_space<vmem>>, %arg9: memref<8x128xf32, #tpu.memory_space<vmem>>) attributes {dimension_semantics = [#tpu.dimension_semantics<parallel>, #tpu.dimension_semantics<arbitrary>], iteration_bounds = array<i64: 1, 1>, scalar_prefetch = 0 : i64, scratch_operands = 1 : i64, tpu.core_type = #tpu.core_type<tc>, window_params = [{transform_indices = @transform_0, window_bounds = array<i64: 8, 8, 128>}, {pipeline_mode = #tpu.pipeline_mode<synchronous>, transform_indices = @transform_1, window_bounds = array<i64: 128, 128>}, {pipeline_mode = #tpu.pipeline_mode<synchronous>, transform_indices = @transform_2, window_bounds = array<i64: 1, 128>}, {pipeline_mode = #tpu.pipeline_mode<synchronous>, transform_indices = @transform_3, window_bounds = array<i64: 128, 128>}, {pipeline_mode = #tpu.pipeline_mode<synchronous>, transform_indices = @transform_4, window_bounds = array<i64: 1, 128>}, {transform_indices = @transform_5, window_bounds = array<i64: 8, 128>}, {transform_indices = @transform_6, window_bounds = array<i64: 8, 128>}]} {
    %c0_i32 = arith.constant 0 : i32
    %0 = arith.cmpi eq, %arg1, %c0_i32 : i32
    %1 = arith.extui %0 : i1 to i32
    %c0_i32_0 = arith.constant 0 : i32
    %2 = arith.cmpi ne, %1, %c0_i32_0 : i32
    scf.if %2 {
      %cst_9 = arith.constant 0.000000e+00 : f32
      %11 = vector.broadcast %cst_9 : f32 to vector<8x128xf32>
      %c0_10 = arith.constant 0 : index
      %c0_11 = arith.constant 0 : index
      %12 = vector.load %arg9[%c0_10, %c0_11] : memref<8x128xf32, #tpu.memory_space<vmem>>, vector<8x128xf32>
      tpu.vector_store %arg9[%c0_10, %c0_11], %11 {strides = array<i32>} : memref<8x128xf32, #tpu.memory_space<vmem>>, vector<8x128xf32>,
    } else {
    }
    %c0 = arith.constant 0 : index
    %c0_1 = arith.constant 0 : index
    %3 = vector.load %arg9[%c0, %c0_1] : memref<8x128xf32, #tpu.memory_space<vmem>>, vector<8x128xf32>
    %c0_2 = arith.constant 0 : index
    %c0_3 = arith.constant 0 : index
    %c0_4 = arith.constant 0 : index
    %4 = vector.load %arg2[%c0_2, %c0_3, %c0_4] : memref<8x8x128xf32, #tpu.memory_space<vmem>>, vector<8x8x128xf32>
    %cst = arith.constant dense<0.000000e+00> : vector<8x128xf32>
    %5 = vector.multi_reduction <add>, %4, %cst [1] : vector<8x8x128xf32> to vector<8x128xf32>
    %6 = arith.addf %3, %5 : vector<8x128xf32>
    %c0_5 = arith.constant 0 : index
    %c0_6 = arith.constant 0 : index
    %7 = vector.load %arg9[%c0_5, %c0_6] : memref<8x128xf32, #tpu.memory_space<vmem>>, vector<8x128xf32>
    tpu.vector_store %arg9[%c0_5, %c0_6], %6 {strides = array<i32>} : memref<8x128xf32, #tpu.memory_space<vmem>>, vector<8x128xf32>,
    %c0_i32_7 = arith.constant 0 : i32
    %8 = arith.cmpi eq, %arg1, %c0_i32_7 : i32
    %9 = arith.extui %8 : i1 to i32
    %c0_i32_8 = arith.constant 0 : i32
    %10 = arith.cmpi ne, %9, %c0_i32_8 : i32
    scf.if %10 {
      %c0_9 = arith.constant 0 : index
      %c0_10 = arith.constant 0 : index
      %11 = vector.load %arg9[%c0_9, %c0_10] : memref<8x128xf32, #tpu.memory_space<vmem>>, vector<8x128xf32>
      %cst_11 = arith.constant 1.250000e-01 : f32
      %12 = vector.broadcast %cst_11 : f32 to vector<8x128xf32>
      %13 = arith.mulf %11, %12 : vector<8x128xf32>
      %c0_12 = arith.constant 0 : index
      %c0_13 = arith.constant 0 : index
      %14 = vector.load %arg3[%c0_12, %c0_13] : memref<128x128xf32, #tpu.memory_space<vmem>>, vector<128x128xf32>
      %cst_14 = arith.constant dense<0.000000e+00> : vector<8x128xf32>
      %15 = tpu.matmul %13, %14, %cst_14 {dimension_numbers = #tpu.dot_dimension_numbers<[1], [0], [0], [1], [0, 0, 1, 1], [], []>} : vector<8x128xf32>, vector<128x128xf32>, vector<8x128xf32> -> vector<8x128xf32>
      %c0_15 = arith.constant 0 : index
      %c0_16 = arith.constant 0 : index
      %16 = vector.load %arg4[%c0_15, %c0_16] : memref<1x128xf32, #tpu.memory_space<vmem>>, vector<1x128xf32>
      %17 = vector.broadcast %16 : vector<1x128xf32> to vector<8x128xf32>
      %18 = arith.addf %15, %17 : vector<8x128xf32>
      %c0_17 = arith.constant 0 : index
      %c0_18 = arith.constant 0 : index
      %19 = vector.load %arg5[%c0_17, %c0_18] : memref<128x128xf32, #tpu.memory_space<vmem>>, vector<128x128xf32>
      %cst_19 = arith.constant dense<0.000000e+00> : vector<8x128xf32>
      %20 = tpu.matmul %18, %19, %cst_19 {dimension_numbers = #tpu.dot_dimension_numbers<[1], [0], [0], [1], [0, 0, 1, 1], [], []>} : vector<8x128xf32>, vector<128x128xf32>, vector<8x128xf32> -> vector<8x128xf32>
      %c0_20 = arith.constant 0 : index
      %c0_21 = arith.constant 0 : index
      %21 = vector.load %arg6[%c0_20, %c0_21] : memref<1x128xf32, #tpu.memory_space<vmem>>, vector<1x128xf32>
      %22 = vector.broadcast %21 : vector<1x128xf32> to vector<8x128xf32>
      %23 = arith.addf %20, %22 : vector<8x128xf32>
      %c0_22 = arith.constant 0 : index
      %c0_23 = arith.constant 0 : index
      %24 = vector.load %arg8[%c0_22, %c0_23] : memref<8x128xf32, #tpu.memory_space<vmem>>, vector<8x128xf32>
      tpu.vector_store %arg8[%c0_22, %c0_23], %18 {strides = array<i32>} : memref<8x128xf32, #tpu.memory_space<vmem>>, vector<8x128xf32>,
      %c0_24 = arith.constant 0 : index
      %c0_25 = arith.constant 0 : index
      %25 = vector.load %arg7[%c0_24, %c0_25] : memref<8x128xf32, #tpu.memory_space<vmem>>, vector<8x128xf32>
      tpu.vector_store %arg7[%c0_24, %c0_25], %23 {strides = array<i32>} : memref<8x128xf32, #tpu.memory_space<vmem>>, vector<8x128xf32>,
    } else {
    }
    return
  }
  func.func @transform_0(%arg0: i32, %arg1: i32) -> (i32, i32, i32) {
    %c0_i32 = arith.constant 0 : i32
    %c0_i32_0 = arith.constant 0 : i32
    return %arg0, %arg1, %c0_i32 : i32, i32, i32
  }
  func.func @transform_1(%arg0: i32, %arg1: i32) -> (i32, i32) {
    %c0_i32 = arith.constant 0 : i32
    %c0_i32_0 = arith.constant 0 : i32
    %c0_i32_1 = arith.constant 0 : i32
    return %c0_i32, %c0_i32_0 : i32, i32
  }
  func.func @transform_2(%arg0: i32, %arg1: i32) -> (i32, i32) {
    %c0_i32 = arith.constant 0 : i32
    %c0_i32_0 = arith.constant 0 : i32
    %c0_i32_1 = arith.constant 0 : i32
    return %c0_i32, %c0_i32_0 : i32, i32
  }
  func.func @transform_3(%arg0: i32, %arg1: i32) -> (i32, i32) {
    %c0_i32 = arith.constant 0 : i32
    %c0_i32_0 = arith.constant 0 : i32
    %c0_i32_1 = arith.constant 0 : i32
    return %c0_i32, %c0_i32_0 : i32, i32
  }
  func.func @transform_4(%arg0: i32, %arg1: i32) -> (i32, i32) {
    %c0_i32 = arith.constant 0 : i32
    %c0_i32_0 = arith.constant 0 : i32
    %c0_i32_1 = arith.constant 0 : i32
    return %c0_i32, %c0_i32_0 : i32, i32
  }
  func.func @transform_5(%arg0: i32, %arg1: i32) -> (i32, i32) {
    %c0_i32 = arith.constant 0 : i32
    %c0_i32_0 = arith.constant 0 : i32
    return %arg0, %c0_i32 : i32, i32
  }
  func.func @transform_6(%arg0: i32, %arg1: i32) -> (i32, i32) {
    %c0_i32 = arith.constant 0 : i32
    %c0_i32_0 = arith.constant 0 : i32
    return %arg0, %c0_i32 : i32, i32
  }
}

</mosaic_0001>

<llo_original>
// kernel: tpu_custom_call.1
$region0: #{tpu_custom_call.1}
  #allocation0 [shape = 'u32[]', space=smem, size = 0x4, offset = 0x4, fixed_abs, tag = 'smem constant byte address 0x4 - core index']
  #allocation1 [shape = 'u32[144,128]{1,0:T(1,128)}', space=vmem, size = 0x12000, scoped, tag = 'internal scratch']
  #allocation2 [shape = 'f32[8,128]{1,0:T(8,128)}', space=vmem, size = 0x1000, scoped, tag = 'scratch operand']
  %s0 = inlined_call_operand.hbm [shape: f32[8,8,128], index: 0, kind: input, shape index: {}]
  %s1 = inlined_call_operand.hbm [shape: f32[128,128], index: 1, kind: input, shape index: {}]
  %s2 = inlined_call_operand.vmem [shape: f32[1,128], index: 2, kind: input, shape index: {}]
  %s3 = inlined_call_operand.hbm [shape: f32[128,128], index: 3, kind: input, shape index: {}]
  %s4 = inlined_call_operand.vmem [shape: f32[1,128], index: 4, kind: input, shape index: {}]
  %s5 = inlined_call_operand.hbm [shape: f32[8,128], index: 5, kind: output, shape index: {0}]
  %s6 = inlined_call_operand.hbm [shape: f32[8,128], index: 6, kind: output, shape index: {1}]
  %7 = xla_tuple %s5, %s6
  %s8 = sld [smem:[#allocation0]]
  $region58: #{tpu_custom_call.1} parent=0
    _
  %s10 = ssub.s32 1, %s8
  %s11 = scalar_select 0, %s10, %s8
  $region1: #{tpu_custom_call.1} parent=0
    #allocation3 [shape = 'u8[32768]{0}', space=vmem, size = 0x8000, scoped, tag = 'input window, operand 0, single buffered']
    #allocation4 [shape = 's32[1]{0}', space=sflag, size = 0x4, scoped, tag = 'scoped memory for tpu_custom_call.1']
    #allocation5 [shape = 's32[1]{0}', space=sflag, size = 0x4, scoped, tag = 'scoped memory for tpu_custom_call.1']
    #allocation6 [shape = 'u8[65536]{0}', space=vmem, size = 0x10000, scoped, tag = 'input window, operand 1, single buffered']
    #allocation7 [shape = 's32[1]{0}', space=sflag, size = 0x4, scoped, tag = 'scoped memory for tpu_custom_call.1']
    #allocation8 [shape = 'u8[65536]{0}', space=vmem, size = 0x10000, scoped, tag = 'input window, operand 3, single buffered']
    #allocation9 [shape = 'u8[4096]{0}', space=vmem, size = 0x1000, scoped, tag = 'output window, operand 0, single buffered']
    #allocation10 [shape = 'u8[4096]{0}', space=vmem, size = 0x1000, scoped, tag = 'output window, operand 1, single buffered']
    #allocation11 [shape = 's32[1]{0}', space=sflag, size = 0x4, scoped, tag = 'scoped memory for tpu_custom_call.1']
    %12 = vsyncpa [#allocation4], 0
    %13 = vsyncpa [#allocation7], 0
    %14 = vsyncpa [#allocation5], 0
    %15 = vsyncpa [#allocation11], 0
    // Predicated region
    $region2: #{tpu_custom_call.1} parent=1 // pred_check
      _
    $region3: #{tpu_custom_call.1} parent=1 // pred_check_branch
      %17 = sbr.rel (0) target = $region5
    $region4: #{tpu_custom_call.1} parent=1 // pred_region
      %s19 = ssub.s32 1024, 1024
      %20 = vsyncadd [#allocation4], %s19
      %s21 = sshll.u32 [#allocation3], 4
      %s22 = int_to_ptr.vmem [resolvable:$true] %s21
      %27 = dma.hbm_to_vmem [thread:$0]  %s0, 1024, %s22, [#allocation4], 128, 128, 8
    $region5: #{tpu_custom_call.1} parent=1 // pred_fallthru
      _
    // Predicated region
    $region6: #{tpu_custom_call.1} parent=1 // pred_check
      _
    $region7: #{tpu_custom_call.1} parent=1 // pred_check_branch
      %29 = sbr.rel (0) target = $region9
    $region8: #{tpu_custom_call.1} parent=1 // pred_region
      %s31 = ssub.s32 2048, 2048
      %32 = vsyncadd [#allocation7], %s31
      %s33 = sshll.u32 [#allocation6], 4
      %s34 = int_to_ptr.vmem [resolvable:$true] %s33
      %39 = dma.hbm_to_vmem [thread:$0]  %s1, 2048, %s34, [#allocation7], 128, 128, 8
    $region9: #{tpu_custom_call.1} parent=1 // pred_fallthru
      _
    // Predicated region
    $region10: #{tpu_custom_call.1} parent=1 // pred_check
      _
    $region11: #{tpu_custom_call.1} parent=1 // pred_check_branch
      %41 = sbr.rel (0) target = $region13
    $region12: #{tpu_custom_call.1} parent=1 // pred_region
      _
    $region13: #{tpu_custom_call.1} parent=1 // pred_fallthru
      _
    // Predicated region
    $region14: #{tpu_custom_call.1} parent=1 // pred_check
      _
    $region15: #{tpu_custom_call.1} parent=1 // pred_check_branch
      %43 = sbr.rel (0) target = $region17
    $region16: #{tpu_custom_call.1} parent=1 // pred_region
      %s45 = ssub.s32 2048, 2048
      %46 = vsyncadd [#allocation7], %s45
      %s47 = sshll.u32 [#allocation8], 4
      %s48 = int_to_ptr.vmem [resolvable:$true] %s47
      %53 = dma.hbm_to_vmem [thread:$0]  %s3, 2048, %s48, [#allocation7], 128, 128, 8
    $region17: #{tpu_custom_call.1} parent=1 // pred_fallthru
      _
    // Predicated region
    $region18: #{tpu_custom_call.1} parent=1 // pred_check
      _
    $region19: #{tpu_custom_call.1} parent=1 // pred_check_branch
      %55 = sbr.rel (0) target = $region21
    $region20: #{tpu_custom_call.1} parent=1 // pred_region
      _
    $region21: #{tpu_custom_call.1} parent=1 // pred_fallthru
      _
    // Predicated region
    $region22: #{tpu_custom_call.1} parent=1 // pred_check
      _
    $region23: #{tpu_custom_call.1} parent=1 // pred_check_branch
      %57 = sbr.rel (0) target = $region25
    $region24: #{tpu_custom_call.1} parent=1 // pred_region
      %58 = dma.done [#allocation4], 1024
    $region25: #{tpu_custom_call.1} parent=1 // pred_fallthru
      _
    // Predicated region
    $region26: #{tpu_custom_call.1} parent=1 // pred_check
      _
    $region27: #{tpu_custom_call.1} parent=1 // pred_check_branch
      %60 = sbr.rel (0) target = $region29
    $region28: #{tpu_custom_call.1} parent=1 // pred_region
      %61 = dma.done [#allocation7], 2048
    $region29: #{tpu_custom_call.1} parent=1 // pred_fallthru
      _
    // Predicated region
    $region30: #{tpu_custom_call.1} parent=1 // pred_check
      _
    $region31: #{tpu_custom_call.1} parent=1 // pred_check_branch
      %63 = sbr.rel (0) target = $region33
    $region32: #{tpu_custom_call.1} parent=1 // pred_region
      %64 = dma.done [#allocation7], 2048
    $region33: #{tpu_custom_call.1} parent=1 // pred_fallthru
      _
    %p65 = scmp.eq.s32.totalorder 0, 0
    // Predicated region
    $region34: #{tpu_custom_call.1} parent=1 // pred_check
      %p66 = pneg %p65
    $region35: #{tpu_custom_call.1} parent=1 // pred_check_branch
      %68 = sbr.rel (%p66) target = $region37
    $region36: #{tpu_custom_call.1} parent=1 // pred_region
      %69 = vst [vmem:[#allocation2] sm:$0xff] 0.0
    $region37: #{tpu_custom_call.1} parent=1 // pred_fallthru
      _
    %v70 = vld [vmem:[#allocation2] sm:$0xff]
    %v71 = vld [vmem:[#allocation3] sm:$0xff]
    %v72 = vld [vmem:[#allocation3 + $0x8] sm:$0xff]
    %v73 = vld [vmem:[#allocation3 + $0x10] sm:$0xff]
    %v74 = vld [vmem:[#allocation3 + $0x18] sm:$0xff]
    %v75 = vld [vmem:[#allocation3 + $0x20] sm:$0xff]
    %v76 = vld [vmem:[#allocation3 + $0x28] sm:$0xff]
    %v77 = vld [vmem:[#allocation3 + $0x30] sm:$0xff]
    %v78 = vld [vmem:[#allocation3 + $0x38] sm:$0xff]
    %v79 = vrot.slane %v71, 4
    %v80 = vadd.f32 %v71, %v79
    %v81 = vrot.slane %v80, 2
    %v82 = vadd.f32 %v80, %v81
    %v83 = vrot.slane %v82, 1
    %v84 = vadd.f32 %v82, %v83
    %v85 = vrot.slane %v72, 4
    %v86 = vadd.f32 %v72, %v85
    %v87 = vrot.slane %v86, 2
    %v88 = vadd.f32 %v86, %v87
    %v89 = vrot.slane %v88, 1
    %v90 = vadd.f32 %v88, %v89
    %v91 = vrot.slane %v73, 4
    %v92 = vadd.f32 %v73, %v91
    %v93 = vrot.slane %v92, 2
    %v94 = vadd.f32 %v92, %v93
    %v95 = vrot.slane %v94, 1
    %v96 = vadd.f32 %v94, %v95
    %v97 = vrot.slane %v74, 4
    %v98 = vadd.f32 %v74, %v97
    %v99 = vrot.slane %v98, 2
    %v100 = vadd.f32 %v98, %v99
    %v101 = vrot.slane %v100, 1
    %v102 = vadd.f32 %v100, %v101
    %v103 = vrot.slane %v75, 4
    %v104 = vadd.f32 %v75, %v103
    %v105 = vrot.slane %v104, 2
    %v106 = vadd.f32 %v104, %v105
    %v107 = vrot.slane %v106, 1
    %v108 = vadd.f32 %v106, %v107
    %v109 = vrot.slane %v76, 4
    %v110 = vadd.f32 %v76, %v109
    %v111 = vrot.slane %v110, 2
    %v112 = vadd.f32 %v110, %v111
    %v113 = vrot.slane %v112, 1
    %v114 = vadd.f32 %v112, %v113
    %v115 = vrot.slane %v77, 4
    %v116 = vadd.f32 %v77, %v115
    %v117 = vrot.slane %v116, 2
    %v118 = vadd.f32 %v116, %v117
    %v119 = vrot.slane %v118, 1
    %v120 = vadd.f32 %v118, %v119
    %v121 = vrot.slane %v78, 4
    %v122 = vadd.f32 %v78, %v121
    %v123 = vrot.slane %v122, 2
    %v124 = vadd.f32 %v122, %v123
    %v125 = vrot.slane %v124, 1
    %v126 = vadd.f32 %v124, %v125
    %vm135 = vcmask 1041409
    %v136 = vsel %vm135, %v90, %v84
    %vm137 = vcmask 1042434
    %v138 = vsel %vm137, %v96, %v136
    %vm139 = vcmask 1043459
    %v140 = vsel %vm139, %v102, %v138
    %vm141 = vcmask 1044484
    %v142 = vsel %vm141, %v108, %v140
    %vm143 = vcmask 1045509
    %v144 = vsel %vm143, %v114, %v142
    %vm145 = vcmask 1046534
    %v146 = vsel %vm145, %v120, %v144
    %vm147 = vcmask 1047559
    %v148 = vsel %vm147, %v126, %v146
    %v150 = vadd.f32 %v70, %v148
    %151 = vst [vmem:[#allocation2] sm:$0xff] %v150
    // Predicated region
    $region38: #{tpu_custom_call.1} parent=1 // pred_check
      %p152 = pneg %p65
    $region39: #{tpu_custom_call.1} parent=1 // pred_check_branch
      %154 = sbr.rel (%p152) target = $region41
    $region40: #{tpu_custom_call.1} parent=1 // pred_region
      %v155 = vld [vmem:[#allocation2] sm:$0xff]
      %v156 = vmul.f32 %v155, 0.125
      %v157 = vld [vmem:[#allocation6] sm:$0xff]
      %v158 = vld [vmem:[#allocation6 + $0x8] sm:$0xff]
      %v159 = vld [vmem:[#allocation6 + $0x10] sm:$0xff]
      %v160 = vld [vmem:[#allocation6 + $0x18] sm:$0xff]
      %v161 = vld [vmem:[#allocation6 + $0x20] sm:$0xff]
      %v162 = vld [vmem:[#allocation6 + $0x28] sm:$0xff]
      %v163 = vld [vmem:[#allocation6 + $0x30] sm:$0xff]
      %v164 = vld [vmem:[#allocation6 + $0x38] sm:$0xff]
      %v165 = vld [vmem:[#allocation6 + $0x40] sm:$0xff]
      %v166 = vld [vmem:[#allocation6 + $0x48] sm:$0xff]
      %v167 = vld [vmem:[#allocation6 + $0x50] sm:$0xff]
      %v168 = vld [vmem:[#allocation6 + $0x58] sm:$0xff]
      %v169 = vld [vmem:[#allocation6 + $0x60] sm:$0xff]
      %v170 = vld [vmem:[#allocation6 + $0x68] sm:$0xff]
      %v171 = vld [vmem:[#allocation6 + $0x70] sm:$0xff]
      %v172 = vld [vmem:[#allocation6 + $0x78] sm:$0xff]
      %v173 = vld [vmem:[%s2] sm:$0x1]
      %v175 = vlaneseq
      %v176 = vshrl.u32 %v175, 7
      %v177 = vsub.s32 0, %v176
      %v178 = vrot.slane %v173, %v177
      %180 = vmatprep.subr.mxu0 0.0
      %181 = vmatpush1.msra.mxu0 %v157
      %182 = vmatprep.subr.mxu0 0.0
      %183 = vmatpush1.msra.mxu0 %v158
      %184 = vmatprep.subr.mxu0 0.0
      %185 = vmatpush1.msra.mxu0 %v159
      %186 = vmatprep.subr.mxu0 0.0
      %187 = vmatpush1.msra.mxu0 %v160
      %188 = vmatprep.subr.mxu0 0.0
      %189 = vmatpush1.msra.mxu0 %v161
      %190 = vmatprep.subr.mxu0 0.0
      %191 = vmatpush1.msra.mxu0 %v162
      %192 = vmatprep.subr.mxu0 0.0
      %193 = vmatpush1.msra.mxu0 %v163
      %194 = vmatprep.subr.mxu0 0.0
      %195 = vmatpush1.msra.mxu0 %v164
      %196 = vmatprep.subr.mxu0 0.0
      %197 = vmatpush1.msra.mxu0 %v165
      %198 = vmatprep.subr.mxu0 0.0
      %199 = vmatpush1.msra.mxu0 %v166
      %200 = vmatprep.subr.mxu0 0.0
      %201 = vmatpush1.msra.mxu0 %v167
      %202 = vmatprep.subr.mxu0 0.0
      %203 = vmatpush1.msra.mxu0 %v168
      %204 = vmatprep.subr.mxu0 0.0
      %205 = vmatpush1.msra.mxu0 %v169
      %206 = vmatprep.subr.mxu0 0.0
      %207 = vmatpush1.msra.mxu0 %v170
      %208 = vmatprep.subr.mxu0 0.0
      %209 = vmatpush1.msra.mxu0 %v171
      %210 = vmatprep.subr.mxu0 0.0
      %211 = vmatpush1.msra.mxu0 %v172
      %212 = vmatprep.subr.mxu0 0.0
      %213 = vmatpush1.msra.mxu0 0.0
      %214 = vmatprep.subr.mxu0 0.0
      %215 = vmatpush1.msra.mxu0 0.0
      %216 = vmatprep.subr.mxu0 0.0
      %217 = vmatpush1.msra.mxu0 0.0
      %218 = vmatprep.subr.mxu0 0.0
      %219 = vmatpush1.msra.mxu0 0.0
      %220 = vmatprep.subr.mxu0 0.0
      %221 = vmatpush1.msra.mxu0 0.0
      %222 = vmatprep.subr.mxu0 0.0
      %223 = vmatpush1.msra.mxu0 0.0
      %224 = vmatprep.subr.mxu0 0.0
      %225 = vmatpush1.msra.mxu0 0.0
      %226 = vmatprep.subr.mxu0 0.0
      %227 = vmatpush1.msra.mxu0 0.0
      %228 = vmatprep.subr.mxu0 0.0
      %229 = vmatpush1.msra.mxu0 0.0
      %230 = vmatprep.subr.mxu0 0.0
      %231 = vmatpush1.msra.mxu0 0.0
      %232 = vmatprep.subr.mxu0 0.0
      %233 = vmatpush1.msra.mxu0 0.0
      %234 = vmatprep.subr.mxu0 0.0
      %235 = vmatpush1.msra.mxu0 0.0
      %236 = vmatprep.subr.mxu0 0.0
      %237 = vmatpush1.msra.mxu0 0.0
      %238 = vmatprep.subr.mxu0 0.0
      %239 = vmatpush1.msra.mxu0 0.0
      %240 = vmatprep.subr.mxu0 0.0
      %241 = vmatpush1.msra.mxu0 0.0
      %242 = vmatprep.subr.mxu0 0.0
      %243 = vmatpush1.msra.mxu0 0.0
      %244 = vmatprep.mubr.f32.mxu0 0.0
      %245 = vmatmul.mubr.f32.gmra.mrb[0].mxu0 %v156
      %v246 = vpop.f32.mrb[0].mxu0
      %v247 = vadd.f32 %v178, %v246
      %v248 = vpop.f32.mrb[0].mxu0
      %249 = vdwg.mxu0
      %v250 = vld [vmem:[#allocation8] sm:$0xff]
      %v251 = vld [vmem:[#allocation8 + $0x8] sm:$0xff]
      %v252 = vld [vmem:[#allocation8 + $0x10] sm:$0xff]
      %v253 = vld [vmem:[#allocation8 + $0x18] sm:$0xff]
      %v254 = vld [vmem:[#allocation8 + $0x20] sm:$0xff]
      %v255 = vld [vmem:[#allocation8 + $0x28] sm:$0xff]
      %v256 = vld [vmem:[#allocation8 + $0x30] sm:$0xff]
      %v257 = vld [vmem:[#allocation8 + $0x38] sm:$0xff]
      %v258 = vld [vmem:[#allocation8 + $0x40] sm:$0xff]
      %v259 = vld [vmem:[#allocation8 + $0x48] sm:$0xff]
      %v260 = vld [vmem:[#allocation8 + $0x50] sm:$0xff]
      %v261 = vld [vmem:[#allocation8 + $0x58] sm:$0xff]
      %v262 = vld [vmem:[#allocation8 + $0x60] sm:$0xff]
      %v263 = vld [vmem:[#allocation8 + $0x68] sm:$0xff]
      %v264 = vld [vmem:[#allocation8 + $0x70] sm:$0xff]
      %v265 = vld [vmem:[#allocation8 + $0x78] sm:$0xff]
      %v266 = vld [vmem:[%s4] sm:$0x1]
      %v268 = vlaneseq
      %v269 = vshrl.u32 %v268, 7
      %v270 = vsub.s32 0, %v269
      %v271 = vrot.slane %v266, %v270
      %273 = vmatprep.subr.mxu0 0.0
      %274 = vmatpush1.msra.mxu0 %v250
      %275 = vmatprep.subr.mxu0 0.0
      %276 = vmatpush1.msra.mxu0 %v251
      %277 = vmatprep.subr.mxu0 0.0
      %278 = vmatpush1.msra.mxu0 %v252
      %279 = vmatprep.subr.mxu0 0.0
      %280 = vmatpush1.msra.mxu0 %v253
      %281 = vmatprep.subr.mxu0 0.0
      %282 = vmatpush1.msra.mxu0 %v254
      %283 = vmatprep.subr.mxu0 0.0
      %284 = vmatpush1.msra.mxu0 %v255
      %285 = vmatprep.subr.mxu0 0.0
      %286 = vmatpush1.msra.mxu0 %v256
      %287 = vmatprep.subr.mxu0 0.0
      %288 = vmatpush1.msra.mxu0 %v257
      %289 = vmatprep.subr.mxu0 0.0
      %290 = vmatpush1.msra.mxu0 %v258
      %291 = vmatprep.subr.mxu0 0.0
      %292 = vmatpush1.msra.mxu0 %v259
      %293 = vmatprep.subr.mxu0 0.0
      %294 = vmatpush1.msra.mxu0 %v260
      %295 = vmatprep.subr.mxu0 0.0
      %296 = vmatpush1.msra.mxu0 %v261
      %297 = vmatprep.subr.mxu0 0.0
      %298 = vmatpush1.msra.mxu0 %v262
      %299 = vmatprep.subr.mxu0 0.0
      %300 = vmatpush1.msra.mxu0 %v263
      %301 = vmatprep.subr.mxu0 0.0
      %302 = vmatpush1.msra.mxu0 %v264
      %303 = vmatprep.subr.mxu0 0.0
      %304 = vmatpush1.msra.mxu0 %v265
      %305 = vmatprep.subr.mxu0 0.0
      %306 = vmatpush1.msra.mxu0 0.0
      %307 = vmatprep.subr.mxu0 0.0
      %308 = vmatpush1.msra.mxu0 0.0
      %309 = vmatprep.subr.mxu0 0.0
      %310 = vmatpush1.msra.mxu0 0.0
      %311 = vmatprep.subr.mxu0 0.0
      %312 = vmatpush1.msra.mxu0 0.0
      %313 = vmatprep.subr.mxu0 0.0
      %314 = vmatpush1.msra.mxu0 0.0
      %315 = vmatprep.subr.mxu0 0.0
      %316 = vmatpush1.msra.mxu0 0.0
      %317 = vmatprep.subr.mxu0 0.0
      %318 = vmatpush1.msra.mxu0 0.0
      %319 = vmatprep.subr.mxu0 0.0
      %320 = vmatpush1.msra.mxu0 0.0
      %321 = vmatprep.subr.mxu0 0.0
      %322 = vmatpush1.msra.mxu0 0.0
      %323 = vmatprep.subr.mxu0 0.0
      %324 = vmatpush1.msra.mxu0 0.0
      %325 = vmatprep.subr.mxu0 0.0
      %326 = vmatpush1.msra.mxu0 0.0
      %327 = vmatprep.subr.mxu0 0.0
      %328 = vmatpush1.msra.mxu0 0.0
      %329 = vmatprep.subr.mxu0 0.0
      %330 = vmatpush1.msra.mxu0 0.0
      %331 = vmatprep.subr.mxu0 0.0
      %332 = vmatpush1.msra.mxu0 0.0
      %333 = vmatprep.subr.mxu0 0.0
      %334 = vmatpush1.msra.mxu0 0.0
      %335 = vmatprep.subr.mxu0 0.0
      %336 = vmatpush1.msra.mxu0 0.0
      %337 = vmatprep.mubr.f32.mxu0 0.0
      %338 = vmatmul.mubr.f32.gmra.mrb[0].mxu0 %v247
      %v339 = vpop.f32.mrb[0].mxu0
      %v340 = vadd.f32 %v271, %v339
      %v341 = vpop.f32.mrb[0].mxu0
      %342 = vdwg.mxu0
      %343 = vst [vmem:[#allocation10] sm:$0xff] %v247
      %344 = vst [vmem:[#allocation9] sm:$0xff] %v340
    $region41: #{tpu_custom_call.1} parent=1 // pred_fallthru
      _
    // Predicated region
    $region42: #{tpu_custom_call.1} parent=1 // pred_check
      _
    $region43: #{tpu_custom_call.1} parent=1 // pred_check_branch
      %346 = sbr.rel (0) target = $region45
    $region44: #{tpu_custom_call.1} parent=1 // pred_region
      %s348 = ssub.s32 128, 128
      %349 = vsyncadd [#allocation5], %s348
      %s351 = sshll.u32 [#allocation9], 4
      %s352 = int_to_ptr.vmem [resolvable:$true] %s351
      %354 = dma.vmem_to_hbm [thread:$0]  %s352, 128, %s5, [#allocation5]
    $region45: #{tpu_custom_call.1} parent=1 // pred_fallthru
      _
    // Predicated region
    $region46: #{tpu_custom_call.1} parent=1 // pred_check
      _
    $region47: #{tpu_custom_call.1} parent=1 // pred_check_branch
      %356 = sbr.rel (0) target = $region49
    $region48: #{tpu_custom_call.1} parent=1 // pred_region
      %s358 = ssub.s32 128, 128
      %359 = vsyncadd [#allocation11], %s358
      %s361 = sshll.u32 [#allocation10], 4
      %s362 = int_to_ptr.vmem [resolvable:$true] %s361
      %364 = dma.vmem_to_hbm [thread:$0]  %s362, 128, %s6, [#allocation11]
    $region49: #{tpu_custom_call.1} parent=1 // pred_fallthru
      _
    // Predicated region
    $region50: #{tpu_custom_call.1} parent=1 // pred_check
      _
    $region51: #{tpu_custom_call.1} parent=1 // pred_check_branch
      %366 = sbr.rel (0) target = $region53
    $region52: #{tpu_custom_call.1} parent=1 // pred_region
      %367 = dma.done [#allocation5], 128
    $region53: #{tpu_custom_call.1} parent=1 // pred_fallthru
      _
    // Predicated region
    $region54: #{tpu_custom_call.1} parent=1 // pred_check
      _
    $region55: #{tpu_custom_call.1} parent=1 // pred_check_branch
      %369 = sbr.rel (0) target = $region57
    $region56: #{tpu_custom_call.1} parent=1 // pred_region
      %370 = dma.done [#allocation11], 128
    $region57: #{tpu_custom_call.1} parent=1 // pred_fallthru
      _
    %371 = vsyncpa [#allocation4], 1
    %372 = vsyncpa [#allocation7], 1
    %373 = vsyncpa [#allocation5], 1
    %374 = vsyncpa [#allocation11], 1

// kernel: tpu_custom_call.1
$region0: #{tpu_custom_call.1}
  #allocation0 [shape = 'u32[]', space=smem, size = 0x4, offset = 0x4, fixed_abs, tag = 'smem constant byte address 0x4 - core index']
  #allocation1 [shape = 'u32[144,128]{1,0:T(1,128)}', space=vmem, size = 0x12000, scoped, tag = 'internal scratch']
  #allocation2 [shape = 'f32[8,128]{1,0:T(8,128)}', space=vmem, size = 0x1000, scoped, tag = 'scratch operand']
  %s0 = inlined_call_operand.hbm [shape: f32[8,8,128], index: 0, kind: input, shape index: {}]
  %s1 = inlined_call_operand.hbm [shape: f32[128,128], index: 1, kind: input, shape index: {}]
  %s2 = inlined_call_operand.vmem [shape: f32[1,128], index: 2, kind: input, shape index: {}]
  %s3 = inlined_call_operand.hbm [shape: f32[128,128], index: 3, kind: input, shape index: {}]
  %s4 = inlined_call_operand.vmem [shape: f32[1,128], index: 4, kind: input, shape index: {}]
  %s5 = inlined_call_operand.hbm [shape: f32[8,128], index: 5, kind: output, shape index: {0}]
  %s6 = inlined_call_operand.hbm [shape: f32[8,128], index: 6, kind: output, shape index: {1}]
  %7 = xla_tuple %s5, %s6
  %s8 = sld [smem:[#allocation0]]
  $region58: #{tpu_custom_call.1} parent=0
    _
  %s10 = ssub.s32 1, %s8
  %s11 = scalar_select 0, %s10, %s8
  $region1: #{tpu_custom_call.1} parent=0
    #allocation3 [shape = 'u8[32768]{0}', space=vmem, size = 0x8000, scoped, tag = 'input window, operand 0, single buffered']
    #allocation4 [shape = 's32[1]{0}', space=sflag, size = 0x4, scoped, tag = 'scoped memory for tpu_custom_call.1']
    #allocation5 [shape = 's32[1]{0}', space=sflag, size = 0x4, scoped, tag = 'scoped memory for tpu_custom_call.1']
    #allocation6 [shape = 'u8[65536]{0}', space=vmem, size = 0x10000, scoped, tag = 'input window, operand 1, single buffered']
    #allocation7 [shape = 's32[1]{0}', space=sflag, size = 0x4, scoped, tag = 'scoped memory for tpu_custom_call.1']
    #allocation8 [shape = 'u8[65536]{0}', space=vmem, size = 0x10000, scoped, tag = 'input window, operand 3, single buffered']
    #allocation9 [shape = 'u8[4096]{0}', space=vmem, size = 0x1000, scoped, tag = 'output window, operand 0, single buffered']
    #allocation10 [shape = 'u8[4096]{0}', space=vmem, size = 0x1000, scoped, tag = 'output window, operand 1, single buffered']
    #allocation11 [shape = 's32[1]{0}', space=sflag, size = 0x4, scoped, tag = 'scoped memory for tpu_custom_call.1']
    %12 = vsyncpa [#allocation4], 0
    %13 = vsyncpa [#allocation7], 0
    %14 = vsyncpa [#allocation5], 0
    %15 = vsyncpa [#allocation11], 0
    // Predicated region
    $region2: #{tpu_custom_call.1} parent=1 // pred_check
      _
    $region3: #{tpu_custom_call.1} parent=1 // pred_check_branch
      %17 = sbr.rel (0) target = $region5
    $region4: #{tpu_custom_call.1} parent=1 // pred_region
      %s19 = ssub.s32 1024, 1024
      %20 = vsyncadd [#allocation4], %s19
      %s21 = sshll.u32 [#allocation3], 4
      %s22 = int_to_ptr.vmem [resolvable:$true] %s21
      %27 = dma.hbm_to_vmem [thread:$0]  %s0, 1024, %s22, [#allocation4], 128, 128, 8
    $region5: #{tpu_custom_call.1} parent=1 // pred_fallthru
      _
    // Predicated region
    $region6: #{tpu_custom_call.1} parent=1 // pred_check
      _
    $region7: #{tpu_custom_call.1} parent=1 // pred_check_branch
      %29 = sbr.rel (0) target = $region9
    $region8: #{tpu_custom_call.1} parent=1 // pred_region
      %s31 = ssub.s32 2048, 2048
      %32 = vsyncadd [#allocation7], %s31
      %s33 = sshll.u32 [#allocation6], 4
      %s34 = int_to_ptr.vmem [resolvable:$true] %s33
      %39 = dma.hbm_to_vmem [thread:$0]  %s1, 2048, %s34, [#allocation7], 128, 128, 8
    $region9: #{tpu_custom_call.1} parent=1 // pred_fallthru
      _
    // Predicated region
    $region10: #{tpu_custom_call.1} parent=1 // pred_check
      _
    $region11: #{tpu_custom_call.1} parent=1 // pred_check_branch
      %41 = sbr.rel (0) target = $region13
    $region12: #{tpu_custom_call.1} parent=1 // pred_region
      _
    $region13: #{tpu_custom_call.1} parent=1 // pred_fallthru
      _
    // Predicated region
    $region14: #{tpu_custom_call.1} parent=1 // pred_check
      _
    $region15: #{tpu_custom_call.1} parent=1 // pred_check_branch
      %43 = sbr.rel (0) target = $region17
    $region16: #{tpu_custom_call.1} parent=1 // pred_region
      %s45 = ssub.s32 2048, 2048
      %46 = vsyncadd [#allocation7], %s45
      %s47 = sshll.u32 [#allocation8], 4
      %s48 = int_to_ptr.vmem [resolvable:$true] %s47
      %53 = dma.hbm_to_vmem [thread:$0]  %s3, 2048, %s48, [#allocation7], 128, 128, 8
    $region17: #{tpu_custom_call.1} parent=1 // pred_fallthru
      _
    // Predicated region
    $region18: #{tpu_custom_call.1} parent=1 // pred_check
      _
    $region19: #{tpu_custom_call.1} parent=1 // pred_check_branch
      %55 = sbr.rel (0) target = $region21
    $region20: #{tpu_custom_call.1} parent=1 // pred_region
      _
    $region21: #{tpu_custom_call.1} parent=1 // pred_fallthru
      _
    // Predicated region
    $region22: #{tpu_custom_call.1} parent=1 // pred_check
      _
    $region23: #{tpu_custom_call.1} parent=1 // pred_check_branch
      %57 = sbr.rel (0) target = $region25
    $region24: #{tpu_custom_call.1} parent=1 // pred_region
      %58 = dma.done [#allocation4], 1024
    $region25: #{tpu_custom_call.1} parent=1 // pred_fallthru
      _
    // Predicated region
    $region26: #{tpu_custom_call.1} parent=1 // pred_check
      _
    $region27: #{tpu_custom_call.1} parent=1 // pred_check_branch
      %60 = sbr.rel (0) target = $region29
    $region28: #{tpu_custom_call.1} parent=1 // pred_region
      %61 = dma.done [#allocation7], 2048
    $region29: #{tpu_custom_call.1} parent=1 // pred_fallthru
      _
    // Predicated region
    $region30: #{tpu_custom_call.1} parent=1 // pred_check
      _
    $region31: #{tpu_custom_call.1} parent=1 // pred_check_branch
      %63 = sbr.rel (0) target = $region33
    $region32: #{tpu_custom_call.1} parent=1 // pred_region
      %64 = dma.done [#allocation7], 2048
    $region33: #{tpu_custom_call.1} parent=1 // pred_fallthru
      _
    %p65 = scmp.eq.s32.totalorder 0, 0
    // Predicated region
    $region34: #{tpu_custom_call.1} parent=1 // pred_check
      %p66 = pneg %p65
    $region35: #{tpu_custom_call.1} parent=1 // pred_check_branch
      %68 = sbr.rel (%p66) target = $region37
    $region36: #{tpu_custom_call.1} parent=1 // pred_region
      %69 = vst [vmem:[#allocation2] sm:$0xff] 0.0
    $region37: #{tpu_custom_call.1} parent=1 // pred_fallthru
      _
    %v70 = vld [vmem:[#allocation2] sm:$0xff]
    %v71 = vld [vmem:[#allocation3] sm:$0xff]
    %v72 = vld [vmem:[#allocation3 + $0x8] sm:$0xff]
    %v73 = vld [vmem:[#allocation3 + $0x10] sm:$0xff]
    %v74 = vld [vmem:[#allocation3 + $0x18] sm:$0xff]
    %v75 = vld [vmem:[#allocation3 + $0x20] sm:$0xff]
    %v76 = vld [vmem:[#allocation3 + $0x28] sm:$0xff]
    %v77 = vld [vmem:[#allocation3 + $0x30] sm:$0xff]
    %v78 = vld [vmem:[#allocation3 + $0x38] sm:$0xff]
    %v79 = vrot.slane %v71, 4
    %v80 = vadd.f32 %v71, %v79
    %v81 = vrot.slane %v80, 2
    %v82 = vadd.f32 %v80, %v81
    %v83 = vrot.slane %v82, 1
    %v84 = vadd.f32 %v82, %v83
    %v85 = vrot.slane %v72, 4
    %v86 = vadd.f32 %v72, %v85
    %v87 = vrot.slane %v86, 2
    %v88 = vadd.f32 %v86, %v87
    %v89 = vrot.slane %v88, 1
    %v90 = vadd.f32 %v88, %v89
    %v91 = vrot.slane %v73, 4
    %v92 = vadd.f32 %v73, %v91
    %v93 = vrot.slane %v92, 2
    %v94 = vadd.f32 %v92, %v93
    %v95 = vrot.slane %v94, 1
    %v96 = vadd.f32 %v94, %v95
    %v97 = vrot.slane %v74, 4
    %v98 = vadd.f32 %v74, %v97
    %v99 = vrot.slane %v98, 2
    %v100 = vadd.f32 %v98, %v99
    %v101 = vrot.slane %v100, 1
    %v102 = vadd.f32 %v100, %v101
    %v103 = vrot.slane %v75, 4
    %v104 = vadd.f32 %v75, %v103
    %v105 = vrot.slane %v104, 2
    %v106 = vadd.f32 %v104, %v105
    %v107 = vrot.slane %v106, 1
    %v108 = vadd.f32 %v106, %v107
    %v109 = vrot.slane %v76, 4
    %v110 = vadd.f32 %v76, %v109
    %v111 = vrot.slane %v110, 2
    %v112 = vadd.f32 %v110, %v111
    %v113 = vrot.slane %v112, 1
    %v114 = vadd.f32 %v112, %v113
    %v115 = vrot.slane %v77, 4
    %v116 = vadd.f32 %v77, %v115
    %v117 = vrot.slane %v116, 2
    %v118 = vadd.f32 %v116, %v117
    %v119 = vrot.slane %v118, 1
    %v120 = vadd.f32 %v118, %v119
    %v121 = vrot.slane %v78, 4
    %v122 = vadd.f32 %v78, %v121
    %v123 = vrot.slane %v122, 2
    %v124 = vadd.f32 %v122, %v123
    %v125 = vrot.slane %v124, 1
    %v126 = vadd.f32 %v124, %v125
    %vm135 = vcmask 1041409
    %v136 = vsel %vm135, %v90, %v84
    %vm137 = vcmask 1042434
    %v138 = vsel %vm137, %v96, %v136
    %vm139 = vcmask 1043459
    %v140 = vsel %vm139, %v102, %v138
    %vm141 = vcmask 1044484
    %v142 = vsel %vm141, %v108, %v140
    %vm143 = vcmask 1045509
    %v144 = vsel %vm143, %v114, %v142
    %vm145 = vcmask 1046534
    %v146 = vsel %vm145, %v120, %v144
    %vm147 = vcmask 1047559
    %v148 = vsel %vm147, %v126, %v146
    %v150 = vadd.f32 %v70, %v148
    %151 = vst [vmem:[#allocation2] sm:$0xff] %v150
    // Predicated region
    $region38: #{tpu_custom_call.1} parent=1 // pred_check
      %p152 = pneg %p65
    $region39: #{tpu_custom_call.1} parent=1 // pred_check_branch
      %154 = sbr.rel (%p152) target = $region41
    $region40: #{tpu_custom_call.1} parent=1 // pred_region
      %v155 = vld [vmem:[#allocation2] sm:$0xff]
      %v156 = vmul.f32 %v155, 0.125
      %v157 = vld [vmem:[#allocation6] sm:$0xff]
      %v158 = vld [vmem:[#allocation6 + $0x8] sm:$0xff]
      %v159 = vld [vmem:[#allocation6 + $0x10] sm:$0xff]
      %v160 = vld [vmem:[#allocation6 + $0x18] sm:$0xff]
      %v161 = vld [vmem:[#allocation6 + $0x20] sm:$0xff]
      %v162 = vld [vmem:[#allocation6 + $0x28] sm:$0xff]
      %v163 = vld [vmem:[#allocation6 + $0x30] sm:$0xff]
      %v164 = vld [vmem:[#allocation6 + $0x38] sm:$0xff]
      %v165 = vld [vmem:[#allocation6 + $0x40] sm:$0xff]
      %v166 = vld [vmem:[#allocation6 + $0x48] sm:$0xff]
      %v167 = vld [vmem:[#allocation6 + $0x50] sm:$0xff]
      %v168 = vld [vmem:[#allocation6 + $0x58] sm:$0xff]
      %v169 = vld [vmem:[#allocation6 + $0x60] sm:$0xff]
      %v170 = vld [vmem:[#allocation6 + $0x68] sm:$0xff]
      %v171 = vld [vmem:[#allocation6 + $0x70] sm:$0xff]
      %v172 = vld [vmem:[#allocation6 + $0x78] sm:$0xff]
      %v173 = vld [vmem:[%s2] sm:$0x1]
      %v175 = vlaneseq
      %v176 = vshrl.u32 %v175, 7
      %v177 = vsub.s32 0, %v176
      %v178 = vrot.slane %v173, %v177
      %180 = vmatprep.subr.mxu0 0.0
      %181 = vmatpush1.msra.mxu0 %v157
      %182 = vmatprep.subr.mxu0 0.0
      %183 = vmatpush1.msra.mxu0 %v158
      %184 = vmatprep.subr.mxu0 0.0
      %185 = vmatpush1.msra.mxu0 %v159
      %186 = vmatprep.subr.mxu0 0.0
      %187 = vmatpush1.msra.mxu0 %v160
      %188 = vmatprep.subr.mxu0 0.0
      %189 = vmatpush1.msra.mxu0 %v161
      %190 = vmatprep.subr.mxu0 0.0
      %191 = vmatpush1.msra.mxu0 %v162
      %192 = vmatprep.subr.mxu0 0.0
      %193 = vmatpush1.msra.mxu0 %v163
      %194 = vmatprep.subr.mxu0 0.0
      %195 = vmatpush1.msra.mxu0 %v164
      %196 = vmatprep.subr.mxu0 0.0
      %197 = vmatpush1.msra.mxu0 %v165
      %198 = vmatprep.subr.mxu0 0.0
      %199 = vmatpush1.msra.mxu0 %v166
      %200 = vmatprep.subr.mxu0 0.0
      %201 = vmatpush1.msra.mxu0 %v167
      %202 = vmatprep.subr.mxu0 0.0
      %203 = vmatpush1.msra.mxu0 %v168
      %204 = vmatprep.subr.mxu0 0.0
      %205 = vmatpush1.msra.mxu0 %v169
      %206 = vmatprep.subr.mxu0 0.0
      %207 = vmatpush1.msra.mxu0 %v170
      %208 = vmatprep.subr.mxu0 0.0
      %209 = vmatpush1.msra.mxu0 %v171
      %210 = vmatprep.subr.mxu0 0.0
      %211 = vmatpush1.msra.mxu0 %v172
      %212 = vmatprep.subr.mxu0 0.0
      %213 = vmatpush1.msra.mxu0 0.0
      %214 = vmatprep.subr.mxu0 0.0
      %215 = vmatpush1.msra.mxu0 0.0
      %216 = vmatprep.subr.mxu0 0.0
      %217 = vmatpush1.msra.mxu0 0.0
      %218 = vmatprep.subr.mxu0 0.0
      %219 = vmatpush1.msra.mxu0 0.0
      %220 = vmatprep.subr.mxu0 0.0
      %221 = vmatpush1.msra.mxu0 0.0
      %222 = vmatprep.subr.mxu0 0.0
      %223 = vmatpush1.msra.mxu0 0.0
      %224 = vmatprep.subr.mxu0 0.0
      %225 = vmatpush1.msra.mxu0 0.0
      %226 = vmatprep.subr.mxu0 0.0
      %227 = vmatpush1.msra.mxu0 0.0
      %228 = vmatprep.subr.mxu0 0.0
      %229 = vmatpush1.msra.mxu0 0.0
      %230 = vmatprep.subr.mxu0 0.0
      %231 = vmatpush1.msra.mxu0 0.0
      %232 = vmatprep.subr.mxu0 0.0
      %233 = vmatpush1.msra.mxu0 0.0
      %234 = vmatprep.subr.mxu0 0.0
      %235 = vmatpush1.msra.mxu0 0.0
      %236 = vmatprep.subr.mxu0 0.0
      %237 = vmatpush1.msra.mxu0 0.0
      %238 = vmatprep.subr.mxu0 0.0
      %239 = vmatpush1.msra.mxu0 0.0
      %240 = vmatprep.subr.mxu0 0.0
      %241 = vmatpush1.msra.mxu0 0.0
      %242 = vmatprep.subr.mxu0 0.0
      %243 = vmatpush1.msra.mxu0 0.0
      %244 = vmatprep.mubr.f32.mxu0 0.0
      %245 = vmatmul.mubr.f32.gmra.mrb[0].mxu0 %v156
      %v246 = vpop.f32.mrb[0].mxu0
      %v247 = vadd.f32 %v178, %v246
      %v248 = vpop.f32.mrb[0].mxu0
      %249 = vdwg.mxu0
      %v250 = vld [vmem:[#allocation8] sm:$0xff]
      %v251 = vld [vmem:[#allocation8 + $0x8] sm:$0xff]
      %v252 = vld [vmem:[#allocation8 + $0x10] sm:$0xff]
      %v253 = vld [vmem:[#allocation8 + $0x18] sm:$0xff]
      %v254 = vld [vmem:[#allocation8 + $0x20] sm:$0xff]
      %v255 = vld [vmem:[#allocation8 + $0x28] sm:$0xff]
      %v256 = vld [vmem:[#allocation8 + $0x30] sm:$0xff]
      %v257 = vld [vmem:[#allocation8 + $0x38] sm:$0xff]
      %v258 = vld [vmem:[#allocation8 + $0x40] sm:$0xff]
      %v259 = vld [vmem:[#allocation8 + $0x48] sm:$0xff]
      %v260 = vld [vmem:[#allocation8 + $0x50] sm:$0xff]
      %v261 = vld [vmem:[#allocation8 + $0x58] sm:$0xff]
      %v262 = vld [vmem:[#allocation8 + $0x60] sm:$0xff]
      %v263 = vld [vmem:[#allocation8 + $0x68] sm:$0xff]
      %v264 = vld [vmem:[#allocation8 + $0x70] sm:$0xff]
      %v265 = vld [vmem:[#allocation8 + $0x78] sm:$0xff]
      %v266 = vld [vmem:[%s4] sm:$0x1]
      %v268 = vlaneseq
      %v269 = vshrl.u32 %v268, 7
      %v270 = vsub.s32 0, %v269
      %v271 = vrot.slane %v266, %v270
      %273 = vmatprep.subr.mxu0 0.0
      %274 = vmatpush1.msra.mxu0 %v250
      %275 = vmatprep.subr.mxu0 0.0
      %276 = vmatpush1.msra.mxu0 %v251
      %277 = vmatprep.subr.mxu0 0.0
      %278 = vmatpush1.msra.mxu0 %v252
      %279 = vmatprep.subr.mxu0 0.0
      %280 = vmatpush1.msra.mxu0 %v253
      %281 = vmatprep.subr.mxu0 0.0
      %282 = vmatpush1.msra.mxu0 %v254
      %283 = vmatprep.subr.mxu0 0.0
      %284 = vmatpush1.msra.mxu0 %v255
      %285 = vmatprep.subr.mxu0 0.0
      %286 = vmatpush1.msra.mxu0 %v256
      %287 = vmatprep.subr.mxu0 0.0
      %288 = vmatpush1.msra.mxu0 %v257
      %289 = vmatprep.subr.mxu0 0.0
      %290 = vmatpush1.msra.mxu0 %v258
      %291 = vmatprep.subr.mxu0 0.0
      %292 = vmatpush1.msra.mxu0 %v259
      %293 = vmatprep.subr.mxu0 0.0
      %294 = vmatpush1.msra.mxu0 %v260
      %295 = vmatprep.subr.mxu0 0.0
      %296 = vmatpush1.msra.mxu0 %v261
      %297 = vmatprep.subr.mxu0 0.0
      %298 = vmatpush1.msra.mxu0 %v262
      %299 = vmatprep.subr.mxu0 0.0
      %300 = vmatpush1.msra.mxu0 %v263
      %301 = vmatprep.subr.mxu0 0.0
      %302 = vmatpush1.msra.mxu0 %v264
      %303 = vmatprep.subr.mxu0 0.0
      %304 = vmatpush1.msra.mxu0 %v265
      %305 = vmatprep.subr.mxu0 0.0
      %306 = vmatpush1.msra.mxu0 0.0
      %307 = vmatprep.subr.mxu0 0.0
      %308 = vmatpush1.msra.mxu0 0.0
      %309 = vmatprep.subr.mxu0 0.0
      %310 = vmatpush1.msra.mxu0 0.0
      %311 = vmatprep.subr.mxu0 0.0
      %312 = vmatpush1.msra.mxu0 0.0
      %313 = vmatprep.subr.mxu0 0.0
      %314 = vmatpush1.msra.mxu0 0.0
      %315 = vmatprep.subr.mxu0 0.0
      %316 = vmatpush1.msra.mxu0 0.0
      %317 = vmatprep.subr.mxu0 0.0
      %318 = vmatpush1.msra.mxu0 0.0
      %319 = vmatprep.subr.mxu0 0.0
      %320 = vmatpush1.msra.mxu0 0.0
      %321 = vmatprep.subr.mxu0 0.0
      %322 = vmatpush1.msra.mxu0 0.0
      %323 = vmatprep.subr.mxu0 0.0
      %324 = vmatpush1.msra.mxu0 0.0
      %325 = vmatprep.subr.mxu0 0.0
      %326 = vmatpush1.msra.mxu0 0.0
      %327 = vmatprep.subr.mxu0 0.0
      %328 = vmatpush1.msra.mxu0 0.0
      %329 = vmatprep.subr.mxu0 0.0
      %330 = vmatpush1.msra.mxu0 0.0
      %331 = vmatprep.subr.mxu0 0.0
      %332 = vmatpush1.msra.mxu0 0.0
      %333 = vmatprep.subr.mxu0 0.0
      %334 = vmatpush1.msra.mxu0 0.0
      %335 = vmatprep.subr.mxu0 0.0
      %336 = vmatpush1.msra.mxu0 0.0
      %337 = vmatprep.mubr.f32.mxu0 0.0
      %338 = vmatmul.mubr.f32.gmra.mrb[0].mxu0 %v247
      %v339 = vpop.f32.mrb[0].mxu0
      %v340 = vadd.f32 %v271, %v339
      %v341 = vpop.f32.mrb[0].mxu0
      %342 = vdwg.mxu0
      %343 = vst [vmem:[#allocation10] sm:$0xff] %v247
      %344 = vst [vmem:[#allocation9] sm:$0xff] %v340
    $region41: #{tpu_custom_call.1} parent=1 // pred_fallthru
      _
    // Predicated region
    $region42: #{tpu_custom_call.1} parent=1 // pred_check
      _
    $region43: #{tpu_custom_call.1} parent=1 // pred_check_branch
      %346 = sbr.rel (0) target = $region45
    $region44: #{tpu_custom_call.1} parent=1 // pred_region
      %s348 = ssub.s32 128, 128
      %349 = vsyncadd [#allocation5], %s348
      %s351 = sshll.u32 [#allocation9], 4
      %s352 = int_to_ptr.vmem [resolvable:$true] %s351
      %354 = dma.vmem_to_hbm [thread:$0]  %s352, 128, %s5, [#allocation5]
    $region45: #{tpu_custom_call.1} parent=1 // pred_fallthru
      _
    // Predicated region
    $region46: #{tpu_custom_call.1} parent=1 // pred_check
      _
    $region47: #{tpu_custom_call.1} parent=1 // pred_check_branch
      %356 = sbr.rel (0) target = $region49
    $region48: #{tpu_custom_call.1} parent=1 // pred_region
      %s358 = ssub.s32 128, 128
      %359 = vsyncadd [#allocation11], %s358
      %s361 = sshll.u32 [#allocation10], 4
      %s362 = int_to_ptr.vmem [resolvable:$true] %s361
      %364 = dma.vmem_to_hbm [thread:$0]  %s362, 128, %s6, [#allocation11]
    $region49: #{tpu_custom_call.1} parent=1 // pred_fallthru
      _
    // Predicated region
    $region50: #{tpu_custom_call.1} parent=1 // pred_check
      _
    $region51: #{tpu_custom_call.1} parent=1 // pred_check_branch
      %366 = sbr.rel (0) target = $region53
    $region52: #{tpu_custom_call.1} parent=1 // pred_region
      %367 = dma.done [#allocation5], 128
    $region53: #{tpu_custom_call.1} parent=1 // pred_fallthru
      _
    // Predicated region
    $region54: #{tpu_custom_call.1} parent=1 // pred_check
      _
    $region55: #{tpu_custom_call.1} parent=1 // pred_check_branch
      %369 = sbr.rel (0) target = $region57
    $region56: #{tpu_custom_call.1} parent=1 // pred_region
      %370 = dma.done [#allocation11], 128
    $region57: #{tpu_custom_call.1} parent=1 // pred_fallthru
      _
    %371 = vsyncpa [#allocation4], 1
    %372 = vsyncpa [#allocation7], 1
    %373 = vsyncpa [#allocation5], 1
    %374 = vsyncpa [#allocation11], 1

</llo_original>
